<compile_context>
chip_gen: v5e
topology: v5e:2x2
jax: 0.10.0
libtpu: 0.0.40
codegen_flags: <defaults>
</compile_context>

<pallas_src>
import functools
import math

import jax
import jax.numpy as jnp
from jax.experimental import pallas as pl
from jax.experimental.pallas import tpu as pltpu


def _relaxed_add_kernel(h1_ref, h2_ref, e1_ref, e2_ref,
                        head_ref, err_ref, *, n_shared, n_e1, n_e2):
    # New head: plain elementwise add.
    head_ref[...] = h1_ref[...] + h2_ref[...]

    # Shared error terms are summed ...
    if n_shared > 0:
        err_ref[:, :n_shared, :] = (e1_ref[:, :n_shared, :]
                                    + e2_ref[:, :n_shared, :])
    # ... remaining terms of operand 1 are copied ...
    if n_e1 > n_shared:
        err_ref[:, n_shared:n_e1, :] = e1_ref[:, n_shared:, :]
    # ... remaining terms of operand 2 are appended.
    if n_e2 > n_shared:
        err_ref[:, n_e1:, :] = e2_ref[:, n_shared:, :]


def _pick_lane_tile(f_pad, max_tf=4096):
    """Largest multiple of 128 that divides f_pad, capped at max_tf."""
    tf = max(128, (min(f_pad, max_tf) // 128) * 128)
    while f_pad % tf:
        tf -= 128
    return tf


def relaxed_add_forward(curr_head, curr_errors, curr_head_2, curr_errors_2,
                        shared_errors=-1):
    """RelaxedAdd.forward: returns (new_head, new_errors)."""
    # TODO(synk): None-valued error operands (degenerate branches in the PyTorch
    # code) are not supported; both error tensors are required here.
    assert curr_errors is not None and curr_errors_2 is not None

    b1, tail1 = curr_head.shape[0], tuple(curr_head.shape[1:])
    b2, tail2 = curr_head_2.shape[0], tuple(curr_head_2.shape[1:])
    out_shape = jnp.broadcast_shapes(curr_head.shape, curr_head_2.shape)
    b_out, out_tail = out_shape[0], tuple(out_shape[1:])

    n_e1 = curr_errors.shape[0] // b1
    n_e2 = curr_errors_2.shape[0] // b2
    assert n_e1 >= 1 and n_e2 >= 1

    n_shared = int(shared_errors)
    if n_shared < 0:
        n_shared = n_e1 if n_e1 == n_e2 else 0
    assert 0 <= n_shared <= min(n_e1, n_e2)
    n_total = n_e1 + n_e2 - n_shared

    dtype = jnp.result_type(curr_head.dtype, curr_head_2.dtype,
                            curr_errors.dtype, curr_errors_2.dtype)
    f = math.prod(out_tail) if out_tail else 1

    # Broadcast (no-op when shapes already match) and flatten all feature dims
    # onto one lane-dense axis. In the common equal-shape case these reshapes
    # are metadata-only.
    h1 = jnp.broadcast_to(curr_head.astype(dtype), out_shape).reshape(b_out, 1, f)
    h2 = jnp.broadcast_to(curr_head_2.astype(dtype), out_shape).reshape(b_out, 1, f)
    e1 = jnp.broadcast_to(
        curr_errors.astype(dtype).reshape((b1, n_e1) + tail1),
        (b_out, n_e1) + out_tail).reshape(b_out, n_e1, f)
    e2 = jnp.broadcast_to(
        curr_errors_2.astype(dtype).reshape((b2, n_e2) + tail2),
        (b_out, n_e2) + out_tail).reshape(b_out, n_e2, f)

    # Pad the lane axis to a multiple of 128 so stores stay unmasked.
    f_pad = ((f + 127) // 128) * 128
    if f_pad != f:
        pad = ((0, 0), (0, 0), (0, f_pad - f))
        h1, h2 = jnp.pad(h1, pad), jnp.pad(h2, pad)
        e1, e2 = jnp.pad(e1, pad), jnp.pad(e2, pad)

    tf = _pick_lane_tile(f_pad)
    n_ft = f_pad // tf

    kernel = functools.partial(_relaxed_add_kernel,
                               n_shared=n_shared, n_e1=n_e1, n_e2=n_e2)

    head_out, err_out = pl.pallas_call(
        kernel,
        out_shape=(
            jax.ShapeDtypeStruct((b_out, 1, f_pad), dtype),
            jax.ShapeDtypeStruct((b_out, n_total, f_pad), dtype),
        ),
        grid=(b_out, n_ft),
        in_specs=[
            pl.BlockSpec((1, 1, tf), lambda b, t: (b, 0, t)),      # head 1
            pl.BlockSpec((1, 1, tf), lambda b, t: (b, 0, t)),      # head 2
            pl.BlockSpec((1, n_e1, tf), lambda b, t: (b, 0, t)),   # errors 1
            pl.BlockSpec((1, n_e2, tf), lambda b, t: (b, 0, t)),   # errors 2
        ],
        out_specs=(
            pl.BlockSpec((1, 1, tf), lambda b, t: (b, 0, t)),      # new head
            pl.BlockSpec((1, n_total, tf), lambda b, t: (b, 0, t)),  # new errors
        ),
        compiler_params=pltpu.CompilerParams(
            dimension_semantics=("parallel", "parallel"),
            vmem_limit_bytes=64 << 20),
    )(h1, h2, e1, e2)

    if f_pad != f:
        head_out = head_out[:, :, :f]
        err_out = err_out[:, :, :f]

    new_head = head_out.reshape(out_shape)
    new_errors = err_out.reshape((b_out * n_total,) + out_tail)
    # TODO(synk): the PyTorch isnan asserts are skipped (no clean data-dependent
    # assert inside a jitted TPU kernel).
    return new_head, new_errors


if __name__ == "__main__":
    key = jax.random.PRNGKey(0)
    k1, k2, k3, k4 = jax.random.split(key, 4)

    # Small shapes consistent with the module: NCHW heads, flattened error terms.
    N, C, H, W = 2, 4, 16, 16
    E1, E2, SHARED = 3, 4, 2   # error-term counts; first 2 terms are shared

    curr_head = jax.random.normal(k1, (N, C, H, W), jnp.float32)
    curr_head_2 = jax.random.normal(k2, (N, C, H, W), jnp.float32)
    curr_errors = jax.random.normal(k3, (N * E1, C, H, W), jnp.float32)
    curr_errors_2 = jax.random.normal(k4, (N * E2, C, H, W), jnp.float32)

    new_head, new_errors = relaxed_add_forward(
        curr_head, curr_errors, curr_head_2, curr_errors_2, SHARED)
    jax.block_until_ready((new_head, new_errors))

    # Pure-JAX transliteration of the PyTorch forward as the reference.
    def ref_forward(h1, e1_flat, h2, e2_flat, shared):
        e1 = jnp.swapaxes(e1_flat.reshape((h1.shape[0], -1) + h1.shape[1:]), 0, 1)
        e2 = jnp.swapaxes(e2_flat.reshape((h2.shape[0], -1) + h2.shape[1:]), 0, 1)
        new_head_r = h1 + h2
        ne1, ne2 = e1.shape[0], e2.shape[0]
        if shared < 0:
            shared = ne1 if ne1 == ne2 else 0
        self_errors = jnp.concatenate([
            e1 * jnp.ones((ne1,) + h2.shape, e1.dtype),
            jnp.zeros((ne2 - shared,) + h1.shape, e1.dtype)
            * jnp.ones((ne2 - shared,) + h2.shape, e1.dtype)], axis=0)
        summand_errors = jnp.concatenate([
            e2[:shared] * jnp.ones_like(e1[:shared]),
            jnp.zeros((ne1 - shared,) + h1.shape, e1.dtype)
            * jnp.ones((ne1 - shared,) + h2.shape, e1.dtype),
            e2[shared:] * jnp.ones((ne2 - shared,) + h1.shape, e1.dtype)], axis=0)
        new_errors_r = self_errors + summand_errors
        new_errors_r = jnp.swapaxes(new_errors_r, 0, 1).reshape(
            (-1,) + new_head_r.shape[1:])
        return new_head_r, new_errors_r

    ref_head, ref_errors = ref_forward(
        curr_head, curr_errors, curr_head_2, curr_errors_2, SHARED)

    assert new_head.shape == (N, C, H, W)
    assert new_errors.shape == (N * (E1 + E2 - SHARED), C, H, W)
    assert jnp.allclose(new_head, ref_head, atol=1e-6, rtol=1e-6)
    assert jnp.allclose(new_errors, ref_errors, atol=1e-6, rtol=1e-6)

    print("KERNEL_OK")
</pallas_src>

<mosaic_0001>
module attributes {stable_mosaic.version = 11 : i64} {
  func.func @_relaxed_add_kernel(%arg0: i32, %arg1: i32, %arg2: memref<1x1x1024xf32, #tpu.memory_space<vmem>>, %arg3: memref<1x1x1024xf32, #tpu.memory_space<vmem>>, %arg4: memref<1x3x1024xf32, #tpu.memory_space<vmem>>, %arg5: memref<1x4x1024xf32, #tpu.memory_space<vmem>>, %arg6: memref<1x1x1024xf32, #tpu.memory_space<vmem>>, %arg7: memref<1x5x1024xf32, #tpu.memory_space<vmem>>) attributes {dimension_semantics = [#tpu.dimension_semantics<parallel>, #tpu.dimension_semantics<parallel>], iteration_bounds = array<i64: 2, 1>, scalar_prefetch = 0 : i64, scratch_operands = 0 : i64, tpu.core_type = #tpu.core_type<tc>, window_params = [{transform_indices = @transform_0, window_bounds = array<i64: 1, 1, 1024>}, {transform_indices = @transform_1, window_bounds = array<i64: 1, 1, 1024>}, {transform_indices = @transform_2, window_bounds = array<i64: 1, 3, 1024>}, {transform_indices = @transform_3, window_bounds = array<i64: 1, 4, 1024>}, {transform_indices = @transform_4, window_bounds = array<i64: 1, 1, 1024>}, {transform_indices = @transform_5, window_bounds = array<i64: 1, 5, 1024>}]} {
    %c0 = arith.constant 0 : index
    %c0_0 = arith.constant 0 : index
    %c0_1 = arith.constant 0 : index
    %0 = vector.load %arg2[%c0, %c0_0, %c0_1] : memref<1x1x1024xf32, #tpu.memory_space<vmem>>, vector<1x1x1024xf32>
    %c0_2 = arith.constant 0 : index
    %c0_3 = arith.constant 0 : index
    %c0_4 = arith.constant 0 : index
    %1 = vector.load %arg3[%c0_2, %c0_3, %c0_4] : memref<1x1x1024xf32, #tpu.memory_space<vmem>>, vector<1x1x1024xf32>
    %2 = arith.addf %0, %1 : vector<1x1x1024xf32>
    %c0_5 = arith.constant 0 : index
    %c0_6 = arith.constant 0 : index
    %c0_7 = arith.constant 0 : index
    %3 = vector.load %arg6[%c0_5, %c0_6, %c0_7] : memref<1x1x1024xf32, #tpu.memory_space<vmem>>, vector<1x1x1024xf32>
    tpu.vector_store %arg6[%c0_5, %c0_6, %c0_7], %2 {strides = array<i32>} : memref<1x1x1024xf32, #tpu.memory_space<vmem>>, vector<1x1x1024xf32>,
    %c0_8 = arith.constant 0 : index
    %c0_9 = arith.constant 0 : index
    %c0_10 = arith.constant 0 : index
    %4 = vector.load %arg4[%c0_8, %c0_9, %c0_10] : memref<1x3x1024xf32, #tpu.memory_space<vmem>>, vector<1x2x1024xf32>
    %c0_11 = arith.constant 0 : index
    %c0_12 = arith.constant 0 : index
    %c0_13 = arith.constant 0 : index
    %5 = vector.load %arg5[%c0_11, %c0_12, %c0_13] : memref<1x4x1024xf32, #tpu.memory_space<vmem>>, vector<1x2x1024xf32>
    %6 = arith.addf %4, %5 : vector<1x2x1024xf32>
    %c0_14 = arith.constant 0 : index
    %c0_15 = arith.constant 0 : index
    %c0_16 = arith.constant 0 : index
    %7 = vector.load %arg7[%c0_14, %c0_15, %c0_16] : memref<1x5x1024xf32, #tpu.memory_space<vmem>>, vector<1x2x1024xf32>
    tpu.vector_store %arg7[%c0_14, %c0_15, %c0_16], %6 {strides = array<i32>} : memref<1x5x1024xf32, #tpu.memory_space<vmem>>, vector<1x2x1024xf32>,
    %c0_17 = arith.constant 0 : index
    %c2 = arith.constant 2 : index
    %c0_18 = arith.constant 0 : index
    %8 = vector.load %arg4[%c0_17, %c2, %c0_18] : memref<1x3x1024xf32, #tpu.memory_space<vmem>>, vector<1x1x1024xf32>
    %c0_19 = arith.constant 0 : index
    %c2_20 = arith.constant 2 : index
    %c0_21 = arith.constant 0 : index
    %9 = vector.load %arg7[%c0_19, %c2_20, %c0_21] : memref<1x5x1024xf32, #tpu.memory_space<vmem>>, vector<1x1x1024xf32>
    tpu.vector_store %arg7[%c0_19, %c2_20, %c0_21], %8 {strides = array<i32>} : memref<1x5x1024xf32, #tpu.memory_space<vmem>>, vector<1x1x1024xf32>,
    %c0_22 = arith.constant 0 : index
    %c2_23 = arith.constant 2 : index
    %c0_24 = arith.constant 0 : index
    %10 = vector.load %arg5[%c0_22, %c2_23, %c0_24] : memref<1x4x1024xf32, #tpu.memory_space<vmem>>, vector<1x2x1024xf32>
    %c0_25 = arith.constant 0 : index
    %c3 = arith.constant 3 : index
    %c0_26 = arith.constant 0 : index
    %11 = vector.load %arg7[%c0_25, %c3, %c0_26] : memref<1x5x1024xf32, #tpu.memory_space<vmem>>, vector<1x2x1024xf32>
    tpu.vector_store %arg7[%c0_25, %c3, %c0_26], %10 {strides = array<i32>} : memref<1x5x1024xf32, #tpu.memory_space<vmem>>, vector<1x2x1024xf32>,
    return
  }
  func.func @transform_0(%arg0: i32, %arg1: i32) -> (i32, i32, i32) {
    %c0_i32 = arith.constant 0 : i32
    %c0_i32_0 = arith.constant 0 : i32
    return %arg0, %c0_i32, %arg1 : i32, i32, i32
  }
  func.func @transform_1(%arg0: i32, %arg1: i32) -> (i32, i32, i32) {
    %c0_i32 = arith.constant 0 : i32
    %c0_i32_0 = arith.constant 0 : i32
    return %arg0, %c0_i32, %arg1 : i32, i32, i32
  }
  func.func @transform_2(%arg0: i32, %arg1: i32) -> (i32, i32, i32) {
    %c0_i32 = arith.constant 0 : i32
    %c0_i32_0 = arith.constant 0 : i32
    return %arg0, %c0_i32, %arg1 : i32, i32, i32
  }
  func.func @transform_3(%arg0: i32, %arg1: i32) -> (i32, i32, i32) {
    %c0_i32 = arith.constant 0 : i32
    %c0_i32_0 = arith.constant 0 : i32
    return %arg0, %c0_i32, %arg1 : i32, i32, i32
  }
  func.func @transform_4(%arg0: i32, %arg1: i32) -> (i32, i32, i32) {
    %c0_i32 = arith.constant 0 : i32
    %c0_i32_0 = arith.constant 0 : i32
    return %arg0, %c0_i32, %arg1 : i32, i32, i32
  }
  func.func @transform_5(%arg0: i32, %arg1: i32) -> (i32, i32, i32) {
    %c0_i32 = arith.constant 0 : i32
    %c0_i32_0 = arith.constant 0 : i32
    return %arg0, %c0_i32, %arg1 : i32, i32, i32
  }
}

</mosaic_0001>

<llo_original>
// kernel: tpu_custom_call.1
$region0: #{tpu_custom_call.1}
  #allocation0 [shape = 'u32[]', space=smem, size = 0x4, offset = 0x4, fixed_abs, tag = 'smem constant byte address 0x4 - core index']
  #allocation1 [shape = 'u32[72,128]{1,0:T(1,128)}', space=vmem, size = 0x9000, scoped, tag = 'internal scratch']
  %s0 = inlined_call_operand.vmem [shape: f32[2,1,1024], index: 0, kind: input, shape index: {}]
  %s1 = inlined_call_operand.vmem [shape: f32[2,1,1024], index: 1, kind: input, shape index: {}]
  %s2 = inlined_call_operand.vmem [shape: f32[2,3,1024], index: 2, kind: input, shape index: {}]
  %s3 = inlined_call_operand.vmem [shape: f32[2,4,1024], index: 3, kind: input, shape index: {}]
  %s4 = inlined_call_operand.hbm [shape: f32[2,1,1024], index: 4, kind: output, shape index: {0}]
  %s5 = inlined_call_operand.vmem [shape: f32[2,5,1024], index: 5, kind: output, shape index: {1}]
  %6 = xla_tuple %s4, %s5
  %s7 = sld [smem:[#allocation0]]
  $region57: #{tpu_custom_call.1} parent=0
    _
  %s9 = ssub.s32 1, %s7
  %s10 = scalar_select 0, %s9, %s7
  $region1: #{tpu_custom_call.1} parent=0
    #allocation2 [shape = 'u8[8192]{0}', space=vmem, size = 0x2000, scoped, tag = 'output window, operand 0']
    #allocation3 [shape = 's32[2]{0}', space=sflag, size = 0x8, scoped, tag = 'scoped memory for tpu_custom_call.1']
    %11 = vsyncpa [#allocation3], 0
    %s12 = scalar_lea.sflag [#allocation3], 1
    %13 = vsyncpa %s12, 0
    loop: start=0, step=1, limit=4
    $region2: #{tpu_custom_call.1} parent=1 // loop_pre_header
      _
    $region3: #{tpu_custom_call.1} parent=1 // loop_header
      %s15 = sphi 0, %s19
      %p16 = scmp.ge.s32.totalorder %s15, 4
      %s22 = sphi 0, %s34
      %s23 = sphi 0, %s30
      %s24 = sphi 0, %s22
      %s25 = sphi 0, %s23
      %s26 = sphi 0, %s24
      %s27 = sphi 0, %s25
      %s39 = sphi 0, %s41
      %s42 = sphi 0, %s39
      %s43 = sphi 0, %s42
      %s59 = sphi 0, %s43
      %s67 = sphi 0, %s69
      %s70 = sphi 0, %s67
      %s71 = sphi 0, %s70
      %s87 = sphi 0, %s71
      %s95 = sphi 0, %s97
      %s98 = sphi 0, %s95
      %s99 = sphi 0, %s98
      %s115 = sphi 0, %s99
      %s123 = sphi 0, %s125
      %s126 = sphi 0, %s123
      %s127 = sphi 0, %s126
      %s143 = sphi 0, %s127
      %s151 = sphi 0, %s153
      %s154 = sphi 0, %s151
      %s155 = sphi 0, %s154
      %s171 = sphi 0, %s155
      %s179 = sphi 0, %s181
      %s182 = sphi 0, %s179
      %s183 = sphi 0, %s182
      %s199 = sphi 0, %s183
    $region4: #{tpu_custom_call.1} parent=1 // loop_header_branch
      %18 = sbr.rel (%p16) target = $region8
    $region5: #{tpu_custom_call.1} parent=1 // loop_body
      %s20 = ssub.s32 %s15, 1
      %s21 = ssub.s32 %s15, 2
      %s28 = sadd.s32 1, %s23
      %p29 = scmp.ge.s32.totalorder %s28, 1
      %s30 = scalar_select %p29, 0, %s28
      %s31 = sadd.s32 1, %s22
      %s32 = scalar_select %p29, %s31, %s22
      %p33 = scmp.ge.s32.totalorder %s32, 2
      %s34 = scalar_select %p33, 0, %s32
      %s35 = ssub.s32 %s22, %s34
      %s36 = ssub.s32 %s23, %s30
      %s37 = sor.u32 %s35, %s36
      %p38 = scmp.eq.s32.totalorder %s37, 0
      %s40 = sadd.s32 %s39, 1
      %s41 = scalar_select %p38, %s39, %s40
      %p44 = pneg %p38
      %p45 = scmp.eq.s32.totalorder %s15, 1
      %p46 = por %p44, %p45
      %p47 = scmp.ne.s32.totalorder %s39, %s42
      %p48 = scmp.eq.s32.totalorder %s15, 0
      %p49 = por %p47, %p48
      %p50 = scmp.ne.s32.totalorder %s39, %s42
      %p51 = scmp.eq.s32.totalorder %s20, 1
      %p52 = por %p50, %p51
      %p53 = scmp.ne.s32.totalorder %s42, %s43
      %p54 = scmp.eq.s32.totalorder %s20, 0
      %p55 = por %p53, %p54
      %p56 = scmp.ne.s32.totalorder %s42, %s43
      %p57 = scmp.eq.s32.totalorder %s21, 1
      %p58 = por %p56, %p57
      %p60 = scmp.ne.s32.totalorder %s43, %s59
      %p61 = scmp.eq.s32.totalorder %s21, 0
      %p62 = por %p60, %p61
      %s63 = ssub.s32 %s22, %s34
      %s64 = ssub.s32 %s23, %s30
      %s65 = sor.u32 %s63, %s64
      %p66 = scmp.eq.s32.totalorder %s65, 0
      %s68 = sadd.s32 %s67, 1
      %s69 = scalar_select %p66, %s67, %s68
      %p72 = pneg %p66
      %p73 = scmp.eq.s32.totalorder %s15, 1
      %p74 = por %p72, %p73
      %p75 = scmp.ne.s32.totalorder %s67, %s70
      %p76 = scmp.eq.s32.totalorder %s15, 0
      %p77 = por %p75, %p76
      %p78 = scmp.ne.s32.totalorder %s67, %s70
      %p79 = scmp.eq.s32.totalorder %s20, 1
      %p80 = por %p78, %p79
      %p81 = scmp.ne.s32.totalorder %s70, %s71
      %p82 = scmp.eq.s32.totalorder %s20, 0
      %p83 = por %p81, %p82
      %p84 = scmp.ne.s32.totalorder %s70, %s71
      %p85 = scmp.eq.s32.totalorder %s21, 1
      %p86 = por %p84, %p85
      %p88 = scmp.ne.s32.totalorder %s71, %s87
      %p89 = scmp.eq.s32.totalorder %s21, 0
      %p90 = por %p88, %p89
      %s91 = ssub.s32 %s22, %s34
      %s92 = ssub.s32 %s23, %s30
      %s93 = sor.u32 %s91, %s92
      %p94 = scmp.eq.s32.totalorder %s93, 0
      %s96 = sadd.s32 %s95, 1
      %s97 = scalar_select %p94, %s95, %s96
      %p100 = pneg %p94
      %p101 = scmp.eq.s32.totalorder %s15, 1
      %p102 = por %p100, %p101
      %p103 = scmp.ne.s32.totalorder %s95, %s98
      %p104 = scmp.eq.s32.totalorder %s15, 0
      %p105 = por %p103, %p104
      %p106 = scmp.ne.s32.totalorder %s95, %s98
      %p107 = scmp.eq.s32.totalorder %s20, 1
      %p108 = por %p106, %p107
      %p109 = scmp.ne.s32.totalorder %s98, %s99
      %p110 = scmp.eq.s32.totalorder %s20, 0
      %p111 = por %p109, %p110
      %p112 = scmp.ne.s32.totalorder %s98, %s99
      %p113 = scmp.eq.s32.totalorder %s21, 1
      %p114 = por %p112, %p113
      %p116 = scmp.ne.s32.totalorder %s99, %s115
      %p117 = scmp.eq.s32.totalorder %s21, 0
      %p118 = por %p116, %p117
      %s119 = ssub.s32 %s22, %s34
      %s120 = ssub.s32 %s23, %s30
      %s121 = sor.u32 %s119, %s120
      %p122 = scmp.eq.s32.totalorder %s121, 0
      %s124 = sadd.s32 %s123, 1
      %s125 = scalar_select %p122, %s123, %s124
      %p128 = pneg %p122
      %p129 = scmp.eq.s32.totalorder %s15, 1
      %p130 = por %p128, %p129
      %p131 = scmp.ne.s32.totalorder %s123, %s126
      %p132 = scmp.eq.s32.totalorder %s15, 0
      %p133 = por %p131, %p132
      %p134 = scmp.ne.s32.totalorder %s123, %s126
      %p135 = scmp.eq.s32.totalorder %s20, 1
      %p136 = por %p134, %p135
      %p137 = scmp.ne.s32.totalorder %s126, %s127
      %p138 = scmp.eq.s32.totalorder %s20, 0
      %p139 = por %p137, %p138
      %p140 = scmp.ne.s32.totalorder %s126, %s127
      %p141 = scmp.eq.s32.totalorder %s21, 1
      %p142 = por %p140, %p141
      %p144 = scmp.ne.s32.totalorder %s127, %s143
      %p145 = scmp.eq.s32.totalorder %s21, 0
      %p146 = por %p144, %p145
      %s147 = ssub.s32 %s22, %s34
      %s148 = ssub.s32 %s23, %s30
      %s149 = sor.u32 %s147, %s148
      %p150 = scmp.eq.s32.totalorder %s149, 0
      %s152 = sadd.s32 %s151, 1
      %s153 = scalar_select %p150, %s151, %s152
      %p156 = pneg %p150
      %p157 = scmp.eq.s32.totalorder %s15, 1
      %p158 = por %p156, %p157
      %p159 = scmp.ne.s32.totalorder %s151, %s154
      %p160 = scmp.eq.s32.totalorder %s15, 0
      %p161 = por %p159, %p160
      %p162 = scmp.ne.s32.totalorder %s151, %s154
      %p163 = scmp.eq.s32.totalorder %s20, 1
      %p164 = por %p162, %p163
      %p165 = scmp.ne.s32.totalorder %s154, %s155
      %p166 = scmp.eq.s32.totalorder %s20, 0
      %p167 = por %p165, %p166
      %p168 = scmp.ne.s32.totalorder %s154, %s155
      %p169 = scmp.eq.s32.totalorder %s21, 1
      %p170 = por %p168, %p169
      %p172 = scmp.ne.s32.totalorder %s155, %s171
      %p173 = scmp.eq.s32.totalorder %s21, 0
      %p174 = por %p172, %p173
      %s175 = ssub.s32 %s22, %s34
      %s176 = ssub.s32 %s23, %s30
      %s177 = sor.u32 %s175, %s176
      %p178 = scmp.eq.s32.totalorder %s177, 0
      %s180 = sadd.s32 %s179, 1
      %s181 = scalar_select %p178, %s179, %s180
      %p184 = pneg %p178
      %p185 = scmp.eq.s32.totalorder %s15, 1
      %p186 = por %p184, %p185
      %p187 = scmp.ne.s32.totalorder %s179, %s182
      %p188 = scmp.eq.s32.totalorder %s15, 0
      %p189 = por %p187, %p188
      %p190 = scmp.ne.s32.totalorder %s179, %s182
      %p191 = scmp.eq.s32.totalorder %s20, 1
      %p192 = por %p190, %p191
      %p193 = scmp.ne.s32.totalorder %s182, %s183
      %p194 = scmp.eq.s32.totalorder %s20, 0
      %p195 = por %p193, %p194
      %p196 = scmp.ne.s32.totalorder %s182, %s183
      %p197 = scmp.eq.s32.totalorder %s21, 1
      %p198 = por %p196, %p197
      %p200 = scmp.ne.s32.totalorder %s183, %s199
      %p201 = scmp.eq.s32.totalorder %s21, 0
      %p202 = por %p200, %p201
      %p203 = scmp.le.s32.totalorder 1, %s15
      %p204 = scmp.lt.s32.totalorder %s15, 3
      %p205 = pnand %p203, %p204
      %p206 = pneg %p205
      // Predicated region
      $region9: #{tpu_custom_call.1} parent=5 // pred_check
        _
      $region10: #{tpu_custom_call.1} parent=5 // pred_check_branch
        %208 = sbr.rel (%p205) target = $region12
      $region11: #{tpu_custom_call.1} parent=5 // pred_region
        %s209 = ssub.s32 %s15, 1
      $region12: #{tpu_custom_call.1} parent=5 // pred_fallthru
        _
      %p210 = scmp.lt.s32.totalorder %s15, 2
      // Predicated region
      $region13: #{tpu_custom_call.1} parent=5 // pred_check
        %p211 = pneg %p210
      $region14: #{tpu_custom_call.1} parent=5 // pred_check_branch
        %213 = sbr.rel (%p211) target = $region16
      $region15: #{tpu_custom_call.1} parent=5 // pred_region
        // Predicated region
        $region17: #{tpu_custom_call.1} parent=15 // pred_check
          %p214 = pneg %p49
        $region18: #{tpu_custom_call.1} parent=15 // pred_check_branch
          %216 = sbr.rel (%p214) target = $region20
        $region19: #{tpu_custom_call.1} parent=15 // pred_region
          %s217 = smul.u32 8, %s23
          %p218 = scmp.lt.s32.totalorder %s22, 1
          %s219 = scalar_select %p218, %s22, 1
          %p220 = scmp.lt.s32.totalorder %s217, 7
          %s221 = scalar_select %p220, %s217, 7
          %s222 = smul.addr %s219, 8
          %s223 = sadd.s32 %s221, %s222
          %s224 = scalar_lea.vmem %s0, %s223
          %s225 = smul.u32 8, %s23
        $region20: #{tpu_custom_call.1} parent=15 // pred_fallthru
          _
        // Predicated region
        $region21: #{tpu_custom_call.1} parent=15 // pred_check
          %p226 = pneg %p77
        $region22: #{tpu_custom_call.1} parent=15 // pred_check_branch
          %228 = sbr.rel (%p226) target = $region24
        $region23: #{tpu_custom_call.1} parent=15 // pred_region
          %s229 = smul.u32 8, %s23
          %p230 = scmp.lt.s32.totalorder %s22, 1
          %s231 = scalar_select %p230, %s22, 1
          %p232 = scmp.lt.s32.totalorder %s229, 7
          %s233 = scalar_select %p232, %s229, 7
          %s234 = smul.addr %s231, 8
          %s235 = sadd.s32 %s233, %s234
          %s236 = scalar_lea.vmem %s1, %s235
          %s237 = smul.u32 8, %s23
        $region24: #{tpu_custom_call.1} parent=15 // pred_fallthru
          _
        // Predicated region
        $region25: #{tpu_custom_call.1} parent=15 // pred_check
          %p238 = pneg %p105
        $region26: #{tpu_custom_call.1} parent=15 // pred_check_branch
          %240 = sbr.rel (%p238) target = $region28
        $region27: #{tpu_custom_call.1} parent=15 // pred_region
          %s241 = smul.u32 8, %s23
          %p242 = scmp.lt.s32.totalorder %s22, 1
          %s243 = scalar_select %p242, %s22, 1
          %p244 = scmp.lt.s32.totalorder %s241, 7
          %s245 = scalar_select %p244, %s241, 7
          %s246 = smul.addr %s243, 8
          %s247 = sadd.s32 %s245, %s246
          %s248 = smul.addr %s247, 4
          %s249 = scalar_lea.vmem %s2, %s248
          %s250 = smul.u32 8, %s23
        $region28: #{tpu_custom_call.1} parent=15 // pred_fallthru
          _
        // Predicated region
        $region29: #{tpu_custom_call.1} parent=15 // pred_check
          %p251 = pneg %p133
        $region30: #{tpu_custom_call.1} parent=15 // pred_check_branch
          %253 = sbr.rel (%p251) target = $region32
        $region31: #{tpu_custom_call.1} parent=15 // pred_region
          %s254 = smul.u32 8, %s23
          %p255 = scmp.lt.s32.totalorder %s22, 1
          %s256 = scalar_select %p255, %s22, 1
          %p257 = scmp.lt.s32.totalorder %s254, 7
          %s258 = scalar_select %p257, %s254, 7
          %s259 = smul.addr %s256, 8
          %s260 = sadd.s32 %s258, %s259
          %s261 = smul.addr %s260, 4
          %s262 = scalar_lea.vmem %s3, %s261
          %s263 = smul.u32 8, %s23
        $region32: #{tpu_custom_call.1} parent=15 // pred_fallthru
          _
      $region16: #{tpu_custom_call.1} parent=5 // pred_fallthru
        _
      %p264 = scmp.le.s32.totalorder 1, %s15
      %p265 = scmp.lt.s32.totalorder %s15, 3
      %p266 = pnand %p264, %p265
      %p267 = pneg %p266
      // Predicated region
      $region33: #{tpu_custom_call.1} parent=5 // pred_check
        _
      $region34: #{tpu_custom_call.1} parent=5 // pred_check_branch
        %269 = sbr.rel (%p266) target = $region36
      $region35: #{tpu_custom_call.1} parent=5 // pred_region
        %s270 = ssub.s32 %s15, 1
        %s271 = smul.u32 8, %s25
        %p272 = scmp.lt.s32.totalorder %s24, 1
        %s273 = scalar_select %p272, %s24, 1
        %p274 = scmp.lt.s32.totalorder %s271, 7
        %s275 = scalar_select %p274, %s271, 7
        %s276 = smul.addr %s273, 8
        %s277 = sadd.s32 %s275, %s276
        %s278 = scalar_lea.vmem %s0, %s277
        %p279 = pneg %p55
        %p280 = pneg %p52
        %s281 = smul.u32 8, %s25
        %p282 = scmp.lt.s32.totalorder %s24, 1
        %s283 = scalar_select %p282, %s24, 1
        %p284 = scmp.lt.s32.totalorder %s281, 7
        %s285 = scalar_select %p284, %s281, 7
        %s286 = smul.addr %s283, 8
        %s287 = sadd.s32 %s285, %s286
        %s288 = scalar_lea.vmem %s1, %s287
        %p289 = pneg %p83
        %p290 = pneg %p80
        %s291 = smul.u32 8, %s25
        %p292 = scmp.lt.s32.totalorder %s24, 1
        %s293 = scalar_select %p292, %s24, 1
        %p294 = scmp.lt.s32.totalorder %s291, 7
        %s295 = scalar_select %p294, %s291, 7
        %s296 = smul.addr %s293, 8
        %s297 = sadd.s32 %s295, %s296
        %s298 = smul.addr %s297, 4
        %s299 = scalar_lea.vmem %s2, %s298
        %p300 = pneg %p111
        %p301 = pneg %p108
        %s302 = smul.u32 8, %s25
        %p303 = scmp.lt.s32.totalorder %s24, 1
        %s304 = scalar_select %p303, %s24, 1
        %p305 = scmp.lt.s32.totalorder %s302, 7
        %s306 = scalar_select %p305, %s302, 7
        %s307 = smul.addr %s304, 8
        %s308 = sadd.s32 %s306, %s307
        %s309 = smul.addr %s308, 4
        %s310 = scalar_lea.vmem %s3, %s309
        %p311 = pneg %p139
        %p312 = pneg %p136
        %p313 = pneg %p167
        %p314 = pneg %p164
        %s315 = sand.u32 %s154, 1
        %s316 = scalar_lea.sflag [#allocation3], %s315
        %s317 = sand.u32 %s154, 1
        %s318 = smul.addr %s317, 8
        %s319 = scalar_lea.vmem [#allocation2], %s318
        %p320 = pneg %p195
        %p321 = pneg %p192
        %s322 = smul.u32 8, %s25
        %p323 = scmp.lt.s32.totalorder %s24, 1
        %s324 = scalar_select %p323, %s24, 1
        %p325 = scmp.lt.s32.totalorder %s322, 7
        %s326 = scalar_select %p325, %s322, 7
        %s327 = smul.addr %s324, 8
        %s328 = sadd.s32 %s326, %s327
        %s329 = smul.addr %s328, 8
        %s330 = scalar_lea.vmem %s5, %s329
        %s331 = smul.u32 8, %s25
        %p332 = scmp.lt.s32.totalorder %s24, 1
        %s333 = scalar_select %p332, %s24, 1
        %p334 = scmp.lt.s32.totalorder %s331, 7
        %s335 = scalar_select %p334, %s331, 7
        %s336 = smul.addr %s333, 8
        %s337 = sadd.s32 %s335, %s336
        %s338 = scalar_lea.vmem %s0, %s337
        %s339 = smul.u32 8, %s25
        %s340 = smul.u32 8, %s25
        %p341 = scmp.lt.s32.totalorder %s24, 1
        %s342 = scalar_select %p341, %s24, 1
        %p343 = scmp.lt.s32.totalorder %s340, 7
        %s344 = scalar_select %p343, %s340, 7
        %s345 = smul.addr %s342, 8
        %s346 = sadd.s32 %s344, %s345
        %s347 = scalar_lea.vmem %s1, %s346
        %s348 = smul.u32 8, %s25
        %s349 = smul.u32 8, %s25
        %p350 = scmp.lt.s32.totalorder %s24, 1
        %s351 = scalar_select %p350, %s24, 1
        %p352 = scmp.lt.s32.totalorder %s349, 7
        %s353 = scalar_select %p352, %s349, 7
        %s354 = smul.addr %s351, 8
        %s355 = sadd.s32 %s353, %s354
        %s356 = smul.addr %s355, 4
        %s357 = scalar_lea.vmem %s2, %s356
        %s358 = smul.u32 8, %s25
        %s359 = smul.u32 8, %s25
        %p360 = scmp.lt.s32.totalorder %s24, 1
        %s361 = scalar_select %p360, %s24, 1
        %p362 = scmp.lt.s32.totalorder %s359, 7
        %s363 = scalar_select %p362, %s359, 7
        %s364 = smul.addr %s361, 8
        %s365 = sadd.s32 %s363, %s364
        %s366 = smul.addr %s365, 4
        %s367 = scalar_lea.vmem %s3, %s366
        %s368 = smul.u32 8, %s25
        %s369 = smul.u32 8, %s25
        %s370 = smul.u32 8, %s25
        %p371 = scmp.lt.s32.totalorder %s24, 1
        %s372 = scalar_select %p371, %s24, 1
        %p373 = scmp.lt.s32.totalorder %s370, 7
        %s374 = scalar_select %p373, %s370, 7
        %s375 = smul.addr %s372, 8
        %s376 = sadd.s32 %s374, %s375
        %s377 = smul.addr %s376, 8
        %s378 = scalar_lea.vmem %s5, %s377
        %s379 = smul.u32 8, %s25
        %v380 = vld [vmem:[%s338] sm:$0xff]
        %v381 = vld [vmem:[%s347] sm:$0xff]
        %v382 = vadd.f32 %v380, %v381
        %383 = vst [vmem:[%s319] sm:$0xff] %v382
        %v384 = vld [vmem:[%s357] sm:$0x33]
        %v385 = vld [vmem:[%s357 + $0x8] sm:$0x33]
        %v386 = vld [vmem:[%s357 + $0x10] sm:$0x33]
        %v387 = vld [vmem:[%s357 + $0x18] sm:$0x33]
        %v388 = vld [vmem:[%s367] sm:$0x33]
        %v389 = vld [vmem:[%s367 + $0x8] sm:$0x33]
        %v390 = vld [vmem:[%s367 + $0x10] sm:$0x33]
        %v391 = vld [vmem:[%s367 + $0x18] sm:$0x33]
        %v392 = vadd.f32 %v384, %v388
        %v393 = vadd.f32 %v385, %v389
        %v394 = vadd.f32 %v386, %v390
        %v395 = vadd.f32 %v387, %v391
        %400 = vst [vmem:[#allocation1] ss:$2 sm:$0xff] %v392
        %s401 = scalar_lea.vmem [#allocation1], 16
        %402 = vst [vmem:[%s401] ss:$2 sm:$0xff] %v393
        %s403 = scalar_lea.vmem [#allocation1], 32
        %404 = vst [vmem:[%s403] ss:$2 sm:$0xff] %v394
        %s405 = scalar_lea.vmem [#allocation1], 48
        %406 = vst [vmem:[%s405] ss:$2 sm:$0xff] %v395
        %v407 = vld.sshfl [vmem:[#allocation1] sm:$0xff pattern:$0x75316420]
        %v408 = vld.sshfl [vmem:[#allocation1 + $0x8] sm:$0xff pattern:$0x75316420]
        %v409 = vld.sshfl [vmem:[#allocation1 + $0x10] sm:$0xff pattern:$0x75316420]
        %v410 = vld.sshfl [vmem:[#allocation1 + $0x18] sm:$0xff pattern:$0x75316420]
        %v411 = vld.sshfl [vmem:[#allocation1 + $0x20] sm:$0xff pattern:$0x75316420]
        %v412 = vld.sshfl [vmem:[#allocation1 + $0x28] sm:$0xff pattern:$0x75316420]
        %v413 = vld.sshfl [vmem:[#allocation1 + $0x30] sm:$0xff pattern:$0x75316420]
        %v414 = vld.sshfl [vmem:[#allocation1 + $0x38] sm:$0xff pattern:$0x75316420]
        %423 = vst [vmem:[%s378] sm:$0x3] %v407
        %424 = vst [vmem:[%s378 + $0x8] sm:$0x3] %v408
        %425 = vst [vmem:[%s378 + $0x10] sm:$0x3] %v409
        %426 = vst [vmem:[%s378 + $0x18] sm:$0x3] %v410
        %427 = vst [vmem:[%s378 + $0x20] sm:$0x3] %v411
        %428 = vst [vmem:[%s378 + $0x28] sm:$0x3] %v412
        %429 = vst [vmem:[%s378 + $0x30] sm:$0x3] %v413
        %430 = vst [vmem:[%s378 + $0x38] sm:$0x3] %v414
        %s431 = scalar_lea.vmem %s357, 2
        %v432 = vld [vmem:[%s431] ss:$4 sm:$0xff]
        %s433 = scalar_lea.vmem %s378, 2
        %434 = vst [vmem:[%s433] ss:$8 sm:$0xf] %v432
        %435 = vst [vmem:[%s433] ss:$8 sm:$0xf0] %v432
        %v436 = vld [vmem:[%s367] sm:$0xcc]
        %v437 = vld [vmem:[%s367 + $0x8] sm:$0xcc]
        %v438 = vld [vmem:[%s367 + $0x10] sm:$0xcc]
        %v439 = vld [vmem:[%s367 + $0x18] sm:$0xcc]
        %444 = vst [vmem:[#allocation1] ss:$2 sm:$0xff] %v436
        %s445 = scalar_lea.vmem [#allocation1], 16
        %446 = vst [vmem:[%s445] ss:$2 sm:$0xff] %v437
        %s447 = scalar_lea.vmem [#allocation1], 32
        %448 = vst [vmem:[%s447] ss:$2 sm:$0xff] %v438
        %s449 = scalar_lea.vmem [#allocation1], 48
        %450 = vst [vmem:[%s449] ss:$2 sm:$0xff] %v439
        %v451 = vld.sshfl [vmem:[#allocation1] sm:$0xff pattern:$0x75316420]
        %v452 = vld.sshfl [vmem:[#allocation1 + $0x8] sm:$0xff pattern:$0x75316420]
        %v453 = vld.sshfl [vmem:[#allocation1 + $0x10] sm:$0xff pattern:$0x75316420]
        %v454 = vld.sshfl [vmem:[#allocation1 + $0x18] sm:$0xff pattern:$0x75316420]
        %v455 = vld.sshfl [vmem:[#allocation1 + $0x20] sm:$0xff pattern:$0x75316420]
        %v456 = vld.sshfl [vmem:[#allocation1 + $0x28] sm:$0xff pattern:$0x75316420]
        %v457 = vld.sshfl [vmem:[#allocation1 + $0x30] sm:$0xff pattern:$0x75316420]
        %v458 = vld.sshfl [vmem:[#allocation1 + $0x38] sm:$0xff pattern:$0x75316420]
        %v459 = vrot.slane %v451, 7
        %v460 = vrot.slane %v452, 7
        %v461 = vrot.slane %v453, 7
        %v462 = vrot.slane %v454, 7
        %v463 = vrot.slane %v455, 7
        %v464 = vrot.slane %v456, 7
        %v465 = vrot.slane %v457, 7
        %v466 = vrot.slane %v458, 7
        %475 = vst [vmem:[%s378] sm:$0x18] %v459
        %476 = vst [vmem:[%s378 + $0x8] sm:$0x18] %v460
        %477 = vst [vmem:[%s378 + $0x10] sm:$0x18] %v461
        %478 = vst [vmem:[%s378 + $0x18] sm:$0x18] %v462
        %479 = vst [vmem:[%s378 + $0x20] sm:$0x18] %v463
        %480 = vst [vmem:[%s378 + $0x28] sm:$0x18] %v464
        %481 = vst [vmem:[%s378 + $0x30] sm:$0x18] %v465
        %482 = vst [vmem:[%s378 + $0x38] sm:$0x18] %v466
        %s483 = sand.u32 %s154, 1
        %s484 = scalar_lea.sflag [#allocation3], %s483
        %s485 = sand.u32 %s154, 1
        %s486 = smul.addr %s485, 8
        %s487 = scalar_lea.vmem [#allocation2], %s486
        %s488 = smul.u32 8, %s25
        %p489 = scmp.lt.s32.totalorder %s24, 1
        %s490 = scalar_select %p489, %s24, 1
        %p491 = scmp.lt.s32.totalorder %s488, 7
        %s492 = scalar_select %p491, %s488, 7
        %s493 = smul.addr %s490, 8
        %s494 = sadd.s32 %s492, %s493
        %s495 = smul.addr %s494, 8
        %s496 = scalar_lea.vmem %s5, %s495
        // Predicated region
        $region37: #{tpu_custom_call.1} parent=35 // pred_check
          %p497 = pneg %p164
        $region38: #{tpu_custom_call.1} parent=35 // pred_check_branch
          %499 = sbr.rel (%p497) target = $region40
        $region39: #{tpu_custom_call.1} parent=35 // pred_region
          %s500 = smul.u32 8, %s25
          %502 = vsyncadd %s484, 0
          %s503 = smul.addr %s24, 8
          %s504 = sadd.s32 %s500, %s503
          %s505 = scalar_lea.hbm %s4, %s504
          %s507 = sshll.u32 %s487, 4
          %s508 = int_to_ptr.vmem [resolvable:$true] %s507
          %s509 = sshll.u32 %s505, 4
          %s510 = int_to_ptr.hbm [resolvable:$true] %s509
          %512 = dma.vmem_to_hbm [thread:$0]  %s508, 128, %s510, %s484
        $region40: #{tpu_custom_call.1} parent=35 // pred_fallthru
          _
        // Predicated region
        $region41: #{tpu_custom_call.1} parent=35 // pred_check
          %p513 = pneg %p192
        $region42: #{tpu_custom_call.1} parent=35 // pred_check_branch
          %515 = sbr.rel (%p513) target = $region44
        $region43: #{tpu_custom_call.1} parent=35 // pred_region
          %s516 = smul.u32 8, %s25
        $region44: #{tpu_custom_call.1} parent=35 // pred_fallthru
          _
      $region36: #{tpu_custom_call.1} parent=5 // pred_fallthru
        _
      %p517 = scmp.le.s32.totalorder 2, %s15
      // Predicated region
      $region45: #{tpu_custom_call.1} parent=5 // pred_check
        %p518 = pneg %p517
      $region46: #{tpu_custom_call.1} parent=5 // pred_check_branch
        %520 = sbr.rel (%p518) target = $region48
      $region47: #{tpu_custom_call.1} parent=5 // pred_region
        %s521 = ssub.s32 %s15, 2
        // Predicated region
        $region49: #{tpu_custom_call.1} parent=47 // pred_check
          %p522 = pneg %p170
        $region50: #{tpu_custom_call.1} parent=47 // pred_check_branch
          %524 = sbr.rel (%p522) target = $region52
        $region51: #{tpu_custom_call.1} parent=47 // pred_region
          %s525 = sand.u32 %s155, 1
          %s526 = scalar_lea.sflag [#allocation3], %s525
          %s527 = sand.u32 %s155, 1
          %s528 = smul.addr %s527, 8
          %s529 = scalar_lea.vmem [#allocation2], %s528
          %531 = dma.done %s526, 128
        $region52: #{tpu_custom_call.1} parent=47 // pred_fallthru
          _
        // Predicated region
        $region53: #{tpu_custom_call.1} parent=47 // pred_check
          %p532 = pneg %p198
        $region54: #{tpu_custom_call.1} parent=47 // pred_check_branch
          %534 = sbr.rel (%p532) target = $region56
        $region55: #{tpu_custom_call.1} parent=47 // pred_region
          %s535 = smul.u32 8, %s27
          %p536 = scmp.lt.s32.totalorder %s26, 1
          %s537 = scalar_select %p536, %s26, 1
          %p538 = scmp.lt.s32.totalorder %s535, 7
          %s539 = scalar_select %p538, %s535, 7
          %s540 = smul.addr %s537, 8
          %s541 = sadd.s32 %s539, %s540
          %s542 = smul.addr %s541, 8
          %s543 = scalar_lea.vmem %s5, %s542
        $region56: #{tpu_custom_call.1} parent=47 // pred_fallthru
          _
      $region48: #{tpu_custom_call.1} parent=5 // pred_fallthru
        _
    $region6: #{tpu_custom_call.1} parent=1 // loop_footer
      %s19 = sadd.s32 1, %s15
    $region7: #{tpu_custom_call.1} parent=1 // loop_footer_branch
      %14 = sbr.rel target = $region3
    $region8: #{tpu_custom_call.1} parent=1 // loop_exit
      _
    %544 = vsyncpa [#allocation3], 1
    %s545 = scalar_lea.sflag [#allocation3], 1
    %546 = vsyncpa %s545, 1

</llo_original>
